<compile_context>
chip_gen: v6e
topology: v6e:2x2x1
jax: 0.10.0
libtpu: 0.0.40
codegen_flags: <defaults>
</compile_context>

<pallas_src>
import jax
import jax.numpy as jnp
from jax.experimental import pallas as pl
from jax.experimental.pallas import tpu as pltpu


def _round_up(x, m):
    return (x + m - 1) // m * m


def _fused_emb_mean_mlp_kernel(ids_ref, fused_ref, w2_ref, b2_ref, o_ref):
    """One B-tile of: sigmoid(relu(counts(ids) @ fused) @ W2 + b2).

    `fused` already folds the embedding table, the 1/S mean, W1 and b1, so the
    whole "embedding + mean + Linear1 + bias" is one MXU matmul here.
    """
    ids = ids_ref[...]                                    # (Bt, S) int32
    bt, seq = ids.shape
    vpad = fused_ref.shape[0]

    # Per-row token counts over the lane-padded vocabulary.  seq is small and
    # static, so this unrolls into `seq` lane-dense compare+adds on (Bt, Vpad).
    # Accumulate in int32; single f32 cast after the loop (cheaper on VALU).
    vocab_iota = jax.lax.broadcasted_iota(jnp.int32, (bt, vpad), 1)
    counts_i = jnp.zeros((bt, vpad), jnp.int32)
    for s in range(seq):                                  # static unroll
        counts_i = counts_i + (ids[:, s:s + 1] == vocab_iota).astype(jnp.int32)
    counts = counts_i.astype(jnp.float32)

    # Embedding + mean + Linear1 + b1 as one MXU matmul, then ReLU.
    h = jnp.maximum(
        jnp.dot(counts, fused_ref[...], preferred_element_type=jnp.float32),
        0.0)

    # Linear2 + Sigmoid, lane-dense (padded) output store.
    z = jnp.dot(h, w2_ref[...], preferred_element_type=jnp.float32) + b2_ref[...]
    o_ref[...] = jax.nn.sigmoid(z).astype(o_ref.dtype)


def prepare_params(emb_table, w1, b1, w2, b2, seq):
    """One-time (init) parameter fusion + padding.  Do NOT call per forward."""
    V, E = emb_table.shape
    H = w1.shape[1]
    O = w2.shape[1]
    Vp = _round_up(V, 128)         # lane-dense counts / matmul K
    Op = _round_up(O, 128)         # lane-dense output store

    # fused[v] = Emb[v] @ W1 / S  (+ b1/S on every row, since counts row-sums
    # to S for any valid id sequence, this reproduces the +b1 exactly).
    fused = (emb_table.astype(jnp.float32) @ w1.astype(jnp.float32)) / jnp.float32(seq)
    fused_p = jnp.zeros((Vp, H), jnp.float32).at[:V].set(fused)
    fused_p = fused_p + b1.reshape(1, H).astype(jnp.float32) / jnp.float32(seq)

    w2_p = jnp.zeros((H, Op), jnp.float32).at[:, :O].set(w2.astype(jnp.float32))
    b2_p = jnp.zeros((1, Op), jnp.float32).at[:, :O].set(
        b2.reshape(1, O).astype(jnp.float32))
    return fused_p, w2_p, b2_p, O


def model_forward(x_ids, fused_p, w2_p, b2_p, out_size, *, block_b=None):
    """x_ids: (B, S) int32 token ids. Returns (B, out_size) float32."""
    B, S = x_ids.shape
    Vp, H = fused_p.shape
    Op = w2_p.shape[1]

    if block_b is None:
        # 128 fills v5e's MXU M and keeps >=2 parallel grid steps for moderate
        # B (dual TC on v7x); 256 once B is large enough to fill the 256-wide
        # MXU on v6e/v7x with at least 2 grid steps.
        block_b = 256 if B > 256 else 128

    Bp = _round_up(B, block_b)
    ids_p = jnp.zeros((Bp, S), jnp.int32).at[:B].set(x_ids.astype(jnp.int32))
    grid = (Bp // block_b,)

    out_p = pl.pallas_call(
        _fused_emb_mean_mlp_kernel,
        out_shape=jax.ShapeDtypeStruct((Bp, Op), jnp.float32),
        grid_spec=pltpu.PrefetchScalarGridSpec(
            num_scalar_prefetch=0,
            grid=grid,
            in_specs=[
                pl.BlockSpec((block_b, S), lambda i: (i, 0)),  # ids tile
                pl.BlockSpec((Vp, H), lambda i: (0, 0)),       # fused table (resident)
                pl.BlockSpec((H, Op), lambda i: (0, 0)),       # W2 (lane-padded)
                pl.BlockSpec((1, Op), lambda i: (0, 0)),       # b2 (lane-padded)
            ],
            out_specs=pl.BlockSpec((block_b, Op), lambda i: (i, 0)),
        ),
        compiler_params=pltpu.CompilerParams(
            dimension_semantics=("parallel",),   # B shards across TCs on v7x
            vmem_limit_bytes=32 * 1024 * 1024,   # explicit; tiny actual usage
        ),
    )(ids_p, fused_p, w2_p, b2_p)

    return out_p[:B, :out_size]


if __name__ == "__main__":
    # Small, deterministic synthetic setup consistent with the module.
    vocab_size = 50
    input_size = 32      # embedding dim == MLP input_size
    hidden_size = 64
    output_size = 8
    batch = 4
    seq = 8

    key = jax.random.PRNGKey(0)
    k_emb, k_ids, k_w1, k_b1, k_w2, k_b2 = jax.random.split(key, 6)

    emb_table = jax.random.normal(k_emb, (vocab_size, input_size), jnp.float32)
    x_ids = jax.random.randint(k_ids, (batch, seq), 0, vocab_size, jnp.int32)

    # Deterministic MLP parameters (synthetic; not loaded from a checkpoint).
    w1 = jax.random.normal(k_w1, (input_size, hidden_size), jnp.float32) * 0.1
    b1 = jax.random.normal(k_b1, (hidden_size,), jnp.float32) * 0.1
    w2 = jax.random.normal(k_w2, (hidden_size, output_size), jnp.float32) * 0.1
    b2 = jax.random.normal(k_b2, (output_size,), jnp.float32) * 0.1

    # One-time parameter fusion/padding (init-time, not per-call).
    fused_p, w2_p, b2_p, out_size = prepare_params(emb_table, w1, b1, w2, b2, seq)
    fused_p, w2_p, b2_p = jax.block_until_ready((fused_p, w2_p, b2_p))

    out = model_forward(x_ids, fused_p, w2_p, b2_p, out_size)
    jax.block_until_ready(out)

    # Pure-JAX reference (same math as the PyTorch module).
    x_emb = jnp.take(emb_table, x_ids, axis=0)            # (B, S, E)
    x_mean = jnp.mean(x_emb, axis=1)                      # (B, E)
    ref = jax.nn.sigmoid(jnp.maximum(x_mean @ w1 + b1, 0.0) @ w2 + b2)

    assert out.shape == (batch, output_size)
    assert bool(jnp.all((out >= 0.0) & (out <= 1.0)))
    assert bool(jnp.allclose(out, ref, atol=1e-4, rtol=1e-4))
    print("KERNEL_OK")
</pallas_src>

<mosaic_0001>
module attributes {stable_mosaic.version = 11 : i64} {
  func.func @_fused_emb_mean_mlp_kernel(%arg0: i32, %arg1: memref<128x8xi32, #tpu.memory_space<vmem>>, %arg2: memref<128x64xf32, #tpu.memory_space<vmem>>, %arg3: memref<64x128xf32, #tpu.memory_space<vmem>>, %arg4: memref<1x128xf32, #tpu.memory_space<vmem>>, %arg5: memref<128x128xf32, #tpu.memory_space<vmem>>) attributes {dimension_semantics = [#tpu.dimension_semantics<parallel>], iteration_bounds = array<i64: 1>, scalar_prefetch = 0 : i64, scratch_operands = 0 : i64, tpu.core_type = #tpu.core_type<tc>, window_params = [{transform_indices = @transform_0, window_bounds = array<i64: 128, 8>}, {pipeline_mode = #tpu.pipeline_mode<synchronous>, transform_indices = @transform_1, window_bounds = array<i64: 128, 64>}, {pipeline_mode = #tpu.pipeline_mode<synchronous>, transform_indices = @transform_2, window_bounds = array<i64: 64, 128>}, {pipeline_mode = #tpu.pipeline_mode<synchronous>, transform_indices = @transform_3, window_bounds = array<i64: 1, 128>}, {transform_indices = @transform_4, window_bounds = array<i64: 128, 128>}]} {
    %c0 = arith.constant 0 : index
    %c0_0 = arith.constant 0 : index
    %0 = vector.load %arg1[%c0, %c0_0] : memref<128x8xi32, #tpu.memory_space<vmem>>, vector<128x8xi32>
    %1 = tpu.iota {dimensions = array<i32: 1>} : vector<128x128xi32>
    %c0_i32 = arith.constant 0 : i32
    %2 = vector.broadcast %c0_i32 : i32 to vector<128x128xi32>
    %3 = vector.extract_strided_slice %0 {offsets = [0, 0], sizes = [128, 1], strides = [1, 1]} : vector<128x8xi32> to vector<128x1xi32>
    %4 = vector.broadcast %3 : vector<128x1xi32> to vector<128x128xi32>
    %5 = arith.cmpi eq, %4, %1 : vector<128x128xi32>
    %6 = arith.extui %5 : vector<128x128xi1> to vector<128x128xi32>
    %7 = arith.addi %2, %6 : vector<128x128xi32>
    %8 = vector.extract_strided_slice %0 {offsets = [0, 1], sizes = [128, 1], strides = [1, 1]} : vector<128x8xi32> to vector<128x1xi32>
    %9 = vector.broadcast %8 : vector<128x1xi32> to vector<128x128xi32>
    %10 = arith.cmpi eq, %9, %1 : vector<128x128xi32>
    %11 = arith.extui %10 : vector<128x128xi1> to vector<128x128xi32>
    %12 = arith.addi %7, %11 : vector<128x128xi32>
    %13 = vector.extract_strided_slice %0 {offsets = [0, 2], sizes = [128, 1], strides = [1, 1]} : vector<128x8xi32> to vector<128x1xi32>
    %14 = vector.broadcast %13 : vector<128x1xi32> to vector<128x128xi32>
    %15 = arith.cmpi eq, %14, %1 : vector<128x128xi32>
    %16 = arith.extui %15 : vector<128x128xi1> to vector<128x128xi32>
    %17 = arith.addi %12, %16 : vector<128x128xi32>
    %18 = vector.extract_strided_slice %0 {offsets = [0, 3], sizes = [128, 1], strides = [1, 1]} : vector<128x8xi32> to vector<128x1xi32>
    %19 = vector.broadcast %18 : vector<128x1xi32> to vector<128x128xi32>
    %20 = arith.cmpi eq, %19, %1 : vector<128x128xi32>
    %21 = arith.extui %20 : vector<128x128xi1> to vector<128x128xi32>
    %22 = arith.addi %17, %21 : vector<128x128xi32>
    %23 = vector.extract_strided_slice %0 {offsets = [0, 4], sizes = [128, 1], strides = [1, 1]} : vector<128x8xi32> to vector<128x1xi32>
    %24 = vector.broadcast %23 : vector<128x1xi32> to vector<128x128xi32>
    %25 = arith.cmpi eq, %24, %1 : vector<128x128xi32>
    %26 = arith.extui %25 : vector<128x128xi1> to vector<128x128xi32>
    %27 = arith.addi %22, %26 : vector<128x128xi32>
    %28 = vector.extract_strided_slice %0 {offsets = [0, 5], sizes = [128, 1], strides = [1, 1]} : vector<128x8xi32> to vector<128x1xi32>
    %29 = vector.broadcast %28 : vector<128x1xi32> to vector<128x128xi32>
    %30 = arith.cmpi eq, %29, %1 : vector<128x128xi32>
    %31 = arith.extui %30 : vector<128x128xi1> to vector<128x128xi32>
    %32 = arith.addi %27, %31 : vector<128x128xi32>
    %33 = vector.extract_strided_slice %0 {offsets = [0, 6], sizes = [128, 1], strides = [1, 1]} : vector<128x8xi32> to vector<128x1xi32>
    %34 = vector.broadcast %33 : vector<128x1xi32> to vector<128x128xi32>
    %35 = arith.cmpi eq, %34, %1 : vector<128x128xi32>
    %36 = arith.extui %35 : vector<128x128xi1> to vector<128x128xi32>
    %37 = arith.addi %32, %36 : vector<128x128xi32>
    %38 = vector.extract_strided_slice %0 {offsets = [0, 7], sizes = [128, 1], strides = [1, 1]} : vector<128x8xi32> to vector<128x1xi32>
    %39 = vector.broadcast %38 : vector<128x1xi32> to vector<128x128xi32>
    %40 = arith.cmpi eq, %39, %1 : vector<128x128xi32>
    %41 = arith.extui %40 : vector<128x128xi1> to vector<128x128xi32>
    %42 = arith.addi %37, %41 : vector<128x128xi32>
    %43 = arith.sitofp %42 : vector<128x128xi32> to vector<128x128xf32>
    %c0_1 = arith.constant 0 : index
    %c0_2 = arith.constant 0 : index
    %44 = vector.load %arg2[%c0_1, %c0_2] : memref<128x64xf32, #tpu.memory_space<vmem>>, vector<128x64xf32>
    %cst = arith.constant dense<0.000000e+00> : vector<128x64xf32>
    %45 = tpu.matmul %43, %44, %cst {dimension_numbers = #tpu.dot_dimension_numbers<[1], [0], [0], [1], [0, 0, 1, 1], [], []>} : vector<128x128xf32>, vector<128x64xf32>, vector<128x64xf32> -> vector<128x64xf32>
    %cst_3 = arith.constant 0.000000e+00 : f32
    %46 = vector.broadcast %cst_3 : f32 to vector<128x64xf32>
    %47 = arith.maximumf %45, %46 : vector<128x64xf32>
    %c0_4 = arith.constant 0 : index
    %c0_5 = arith.constant 0 : index
    %48 = vector.load %arg3[%c0_4, %c0_5] : memref<64x128xf32, #tpu.memory_space<vmem>>, vector<64x128xf32>
    %cst_6 = arith.constant dense<0.000000e+00> : vector<128x128xf32>
    %49 = tpu.matmul %47, %48, %cst_6 {dimension_numbers = #tpu.dot_dimension_numbers<[1], [0], [0], [1], [0, 0, 1, 1], [], []>} : vector<128x64xf32>, vector<64x128xf32>, vector<128x128xf32> -> vector<128x128xf32>
    %c0_7 = arith.constant 0 : index
    %c0_8 = arith.constant 0 : index
    %50 = vector.load %arg4[%c0_7, %c0_8] : memref<1x128xf32, #tpu.memory_space<vmem>>, vector<1x128xf32>
    %51 = vector.broadcast %50 : vector<1x128xf32> to vector<128x128xf32>
    %52 = arith.addf %49, %51 : vector<128x128xf32>
    %53 = arith.negf %52 : vector<128x128xf32>
    %54 = math.exp %53 : vector<128x128xf32>
    %cst_9 = arith.constant 1.000000e+00 : f32
    %55 = vector.broadcast %cst_9 : f32 to vector<128x128xf32>
    %56 = arith.addf %55, %54 : vector<128x128xf32>
    %57 = arith.divf %55, %56 : vector<128x128xf32>
    %c0_10 = arith.constant 0 : index
    %c0_11 = arith.constant 0 : index
    %58 = vector.load %arg5[%c0_10, %c0_11] : memref<128x128xf32, #tpu.memory_space<vmem>>, vector<128x128xf32>
    tpu.vector_store %arg5[%c0_10, %c0_11], %57 {strides = array<i32>} : memref<128x128xf32, #tpu.memory_space<vmem>>, vector<128x128xf32>,
    return
  }
  func.func @transform_0(%arg0: i32) -> (i32, i32) {
    %c0_i32 = arith.constant 0 : i32
    %c0_i32_0 = arith.constant 0 : i32
    return %arg0, %c0_i32 : i32, i32
  }
  func.func @transform_1(%arg0: i32) -> (i32, i32) {
    %c0_i32 = arith.constant 0 : i32
    %c0_i32_0 = arith.constant 0 : i32
    %c0_i32_1 = arith.constant 0 : i32
    return %c0_i32, %c0_i32_0 : i32, i32
  }
  func.func @transform_2(%arg0: i32) -> (i32, i32) {
    %c0_i32 = arith.constant 0 : i32
    %c0_i32_0 = arith.constant 0 : i32
    %c0_i32_1 = arith.constant 0 : i32
    return %c0_i32, %c0_i32_0 : i32, i32
  }
  func.func @transform_3(%arg0: i32) -> (i32, i32) {
    %c0_i32 = arith.constant 0 : i32
    %c0_i32_0 = arith.constant 0 : i32
    %c0_i32_1 = arith.constant 0 : i32
    return %c0_i32, %c0_i32_0 : i32, i32
  }
  func.func @transform_4(%arg0: i32) -> (i32, i32) {
    %c0_i32 = arith.constant 0 : i32
    %c0_i32_0 = arith.constant 0 : i32
    return %arg0, %c0_i32 : i32, i32
  }
}

</mosaic_0001>

<llo_original>
// kernel: tpu_custom_call.1
$region0: #{tpu_custom_call.1}
  #allocation0 [shape = 'u32[]', space=smem, size = 0x4, offset = 0x4, fixed_abs, tag = 'smem constant byte address 0x4 - core index']
  #allocation1 [shape = 'u32[144,128]{1,0:T(1,128)}', space=vmem, size = 0x12000, scoped, tag = 'internal scratch']
  %s0 = inlined_call_operand.vmem [shape: s32[128,8], index: 0, kind: input, shape index: {}]
  %s1 = inlined_call_operand.vmem [shape: f32[128,64], index: 1, kind: input, shape index: {}]
  %s2 = inlined_call_operand.vmem [shape: f32[64,128], index: 2, kind: input, shape index: {}]
  %s3 = inlined_call_operand.vmem [shape: f32[1,128], index: 3, kind: input, shape index: {}]
  %s4 = inlined_call_operand.hbm [shape: f32[128,128], index: 4, kind: output, shape index: {}]
  %s5 = sld [smem:[#allocation0]]
  $region26: #{tpu_custom_call.1} parent=0
    _
  %s7 = ssub.s32 1, %s5
  %s8 = scalar_select 0, %s7, %s5
  $region1: #{tpu_custom_call.1} parent=0
    #allocation2 [shape = 'u8[65536]{0}', space=vmem, size = 0x10000, scoped, tag = 'output window, operand 0, single buffered']
    #allocation3 [shape = 's32[1]{0}', space=sflag, size = 0x4, scoped, tag = 'scoped memory for tpu_custom_call.1']
    %9 = vsyncpa [#allocation3], 0
    // Predicated region
    $region2: #{tpu_custom_call.1} parent=1 // pred_check
      _
    $region3: #{tpu_custom_call.1} parent=1 // pred_check_branch
      %11 = sbr.rel (0) target = $region5
    $region4: #{tpu_custom_call.1} parent=1 // pred_region
      _
    $region5: #{tpu_custom_call.1} parent=1 // pred_fallthru
      _
    // Predicated region
    $region6: #{tpu_custom_call.1} parent=1 // pred_check
      _
    $region7: #{tpu_custom_call.1} parent=1 // pred_check_branch
      %13 = sbr.rel (0) target = $region9
    $region8: #{tpu_custom_call.1} parent=1 // pred_region
      _
    $region9: #{tpu_custom_call.1} parent=1 // pred_fallthru
      _
    // Predicated region
    $region10: #{tpu_custom_call.1} parent=1 // pred_check
      _
    $region11: #{tpu_custom_call.1} parent=1 // pred_check_branch
      %15 = sbr.rel (0) target = $region13
    $region12: #{tpu_custom_call.1} parent=1 // pred_region
      _
    $region13: #{tpu_custom_call.1} parent=1 // pred_fallthru
      _
    // Predicated region
    $region14: #{tpu_custom_call.1} parent=1 // pred_check
      _
    $region15: #{tpu_custom_call.1} parent=1 // pred_check_branch
      %17 = sbr.rel (0) target = $region17
    $region16: #{tpu_custom_call.1} parent=1 // pred_region
      _
    $region17: #{tpu_custom_call.1} parent=1 // pred_fallthru
      _
    %v18 = vld [vmem:[%s0] sm:$0xff]
    %v19 = vld [vmem:[%s0 + $0x8] sm:$0xff]
    %v20 = vld [vmem:[%s0 + $0x10] sm:$0xff]
    %v21 = vld [vmem:[%s0 + $0x18] sm:$0xff]
    %v22 = vld [vmem:[%s0 + $0x20] sm:$0xff]
    %v23 = vld [vmem:[%s0 + $0x28] sm:$0xff]
    %v24 = vld [vmem:[%s0 + $0x30] sm:$0xff]
    %v25 = vld [vmem:[%s0 + $0x38] sm:$0xff]
    %v26 = vld [vmem:[%s0 + $0x40] sm:$0xff]
    %v27 = vld [vmem:[%s0 + $0x48] sm:$0xff]
    %v28 = vld [vmem:[%s0 + $0x50] sm:$0xff]
    %v29 = vld [vmem:[%s0 + $0x58] sm:$0xff]
    %v30 = vld [vmem:[%s0 + $0x60] sm:$0xff]
    %v31 = vld [vmem:[%s0 + $0x68] sm:$0xff]
    %v32 = vld [vmem:[%s0 + $0x70] sm:$0xff]
    %v33 = vld [vmem:[%s0 + $0x78] sm:$0xff]
    %v34 = vlaneseq
    %v35 = vand.u32 %v34, 127
    %36 = vset.pattern.permute.xlu0 0
    %37 = vperm.xlu0 %36, %v18
    %v38 = vpop.permute.xlu0 %37
    %39 = vset.pattern.permute.xlu0 0
    %40 = vperm.xlu0 %39, %v19
    %v41 = vpop.permute.xlu0 %40
    %42 = vset.pattern.permute.xlu0 0
    %43 = vperm.xlu0 %42, %v20
    %v44 = vpop.permute.xlu0 %43
    %45 = vset.pattern.permute.xlu0 0
    %46 = vperm.xlu0 %45, %v21
    %v47 = vpop.permute.xlu0 %46
    %48 = vset.pattern.permute.xlu0 0
    %49 = vperm.xlu0 %48, %v22
    %v50 = vpop.permute.xlu0 %49
    %51 = vset.pattern.permute.xlu0 0
    %52 = vperm.xlu0 %51, %v23
    %v53 = vpop.permute.xlu0 %52
    %54 = vset.pattern.permute.xlu0 0
    %55 = vperm.xlu0 %54, %v24
    %v56 = vpop.permute.xlu0 %55
    %57 = vset.pattern.permute.xlu0 0
    %58 = vperm.xlu0 %57, %v25
    %v59 = vpop.permute.xlu0 %58
    %60 = vset.pattern.permute.xlu0 0
    %61 = vperm.xlu0 %60, %v26
    %v62 = vpop.permute.xlu0 %61
    %63 = vset.pattern.permute.xlu0 0
    %64 = vperm.xlu0 %63, %v27
    %v65 = vpop.permute.xlu0 %64
    %66 = vset.pattern.permute.xlu0 0
    %67 = vperm.xlu0 %66, %v28
    %v68 = vpop.permute.xlu0 %67
    %69 = vset.pattern.permute.xlu0 0
    %70 = vperm.xlu0 %69, %v29
    %v71 = vpop.permute.xlu0 %70
    %72 = vset.pattern.permute.xlu0 0
    %73 = vperm.xlu0 %72, %v30
    %v74 = vpop.permute.xlu0 %73
    %75 = vset.pattern.permute.xlu0 0
    %76 = vperm.xlu0 %75, %v31
    %v77 = vpop.permute.xlu0 %76
    %78 = vset.pattern.permute.xlu0 0
    %79 = vperm.xlu0 %78, %v32
    %v80 = vpop.permute.xlu0 %79
    %81 = vset.pattern.permute.xlu0 0
    %82 = vperm.xlu0 %81, %v33
    %v83 = vpop.permute.xlu0 %82
    %vm84 = vcmp.eq.s32.totalorder %v38, %v35
    %vm85 = vcmp.eq.s32.totalorder %v41, %v35
    %vm86 = vcmp.eq.s32.totalorder %v44, %v35
    %vm87 = vcmp.eq.s32.totalorder %v47, %v35
    %vm88 = vcmp.eq.s32.totalorder %v50, %v35
    %vm89 = vcmp.eq.s32.totalorder %v53, %v35
    %vm90 = vcmp.eq.s32.totalorder %v56, %v35
    %vm91 = vcmp.eq.s32.totalorder %v59, %v35
    %vm92 = vcmp.eq.s32.totalorder %v62, %v35
    %vm93 = vcmp.eq.s32.totalorder %v65, %v35
    %vm94 = vcmp.eq.s32.totalorder %v68, %v35
    %vm95 = vcmp.eq.s32.totalorder %v71, %v35
    %vm96 = vcmp.eq.s32.totalorder %v74, %v35
    %vm97 = vcmp.eq.s32.totalorder %v77, %v35
    %vm98 = vcmp.eq.s32.totalorder %v80, %v35
    %vm99 = vcmp.eq.s32.totalorder %v83, %v35
    %v100 = vsel %vm84, 1, 0
    %v101 = vsel %vm85, 1, 0
    %v102 = vsel %vm86, 1, 0
    %v103 = vsel %vm87, 1, 0
    %v104 = vsel %vm88, 1, 0
    %v105 = vsel %vm89, 1, 0
    %v106 = vsel %vm90, 1, 0
    %v107 = vsel %vm91, 1, 0
    %v108 = vsel %vm92, 1, 0
    %v109 = vsel %vm93, 1, 0
    %v110 = vsel %vm94, 1, 0
    %v111 = vsel %vm95, 1, 0
    %v112 = vsel %vm96, 1, 0
    %v113 = vsel %vm97, 1, 0
    %v114 = vsel %vm98, 1, 0
    %v115 = vsel %vm99, 1, 0
    %116 = vset.pattern.permute.xlu0 1
    %117 = vperm.xlu0 %116, %v18
    %v118 = vpop.permute.xlu0 %117
    %119 = vset.pattern.permute.xlu0 1
    %120 = vperm.xlu0 %119, %v19
    %v121 = vpop.permute.xlu0 %120
    %122 = vset.pattern.permute.xlu0 1
    %123 = vperm.xlu0 %122, %v20
    %v124 = vpop.permute.xlu0 %123
    %125 = vset.pattern.permute.xlu0 1
    %126 = vperm.xlu0 %125, %v21
    %v127 = vpop.permute.xlu0 %126
    %128 = vset.pattern.permute.xlu0 1
    %129 = vperm.xlu0 %128, %v22
    %v130 = vpop.permute.xlu0 %129
    %131 = vset.pattern.permute.xlu0 1
    %132 = vperm.xlu0 %131, %v23
    %v133 = vpop.permute.xlu0 %132
    %134 = vset.pattern.permute.xlu0 1
    %135 = vperm.xlu0 %134, %v24
    %v136 = vpop.permute.xlu0 %135
    %137 = vset.pattern.permute.xlu0 1
    %138 = vperm.xlu0 %137, %v25
    %v139 = vpop.permute.xlu0 %138
    %140 = vset.pattern.permute.xlu0 1
    %141 = vperm.xlu0 %140, %v26
    %v142 = vpop.permute.xlu0 %141
    %143 = vset.pattern.permute.xlu0 1
    %144 = vperm.xlu0 %143, %v27
    %v145 = vpop.permute.xlu0 %144
    %146 = vset.pattern.permute.xlu0 1
    %147 = vperm.xlu0 %146, %v28
    %v148 = vpop.permute.xlu0 %147
    %149 = vset.pattern.permute.xlu0 1
    %150 = vperm.xlu0 %149, %v29
    %v151 = vpop.permute.xlu0 %150
    %152 = vset.pattern.permute.xlu0 1
    %153 = vperm.xlu0 %152, %v30
    %v154 = vpop.permute.xlu0 %153
    %155 = vset.pattern.permute.xlu0 1
    %156 = vperm.xlu0 %155, %v31
    %v157 = vpop.permute.xlu0 %156
    %158 = vset.pattern.permute.xlu0 1
    %159 = vperm.xlu0 %158, %v32
    %v160 = vpop.permute.xlu0 %159
    %161 = vset.pattern.permute.xlu0 1
    %162 = vperm.xlu0 %161, %v33
    %v163 = vpop.permute.xlu0 %162
    %vm164 = vcmp.eq.s32.totalorder %v118, %v35
    %vm165 = vcmp.eq.s32.totalorder %v121, %v35
    %vm166 = vcmp.eq.s32.totalorder %v124, %v35
    %vm167 = vcmp.eq.s32.totalorder %v127, %v35
    %vm168 = vcmp.eq.s32.totalorder %v130, %v35
    %vm169 = vcmp.eq.s32.totalorder %v133, %v35
    %vm170 = vcmp.eq.s32.totalorder %v136, %v35
    %vm171 = vcmp.eq.s32.totalorder %v139, %v35
    %vm172 = vcmp.eq.s32.totalorder %v142, %v35
    %vm173 = vcmp.eq.s32.totalorder %v145, %v35
    %vm174 = vcmp.eq.s32.totalorder %v148, %v35
    %vm175 = vcmp.eq.s32.totalorder %v151, %v35
    %vm176 = vcmp.eq.s32.totalorder %v154, %v35
    %vm177 = vcmp.eq.s32.totalorder %v157, %v35
    %vm178 = vcmp.eq.s32.totalorder %v160, %v35
    %vm179 = vcmp.eq.s32.totalorder %v163, %v35
    %v180 = vsel %vm164, 1, 0
    %v181 = vsel %vm165, 1, 0
    %v182 = vsel %vm166, 1, 0
    %v183 = vsel %vm167, 1, 0
    %v184 = vsel %vm168, 1, 0
    %v185 = vsel %vm169, 1, 0
    %v186 = vsel %vm170, 1, 0
    %v187 = vsel %vm171, 1, 0
    %v188 = vsel %vm172, 1, 0
    %v189 = vsel %vm173, 1, 0
    %v190 = vsel %vm174, 1, 0
    %v191 = vsel %vm175, 1, 0
    %v192 = vsel %vm176, 1, 0
    %v193 = vsel %vm177, 1, 0
    %v194 = vsel %vm178, 1, 0
    %v195 = vsel %vm179, 1, 0
    %v196 = vadd.s32 %v100, %v180
    %v197 = vadd.s32 %v101, %v181
    %v198 = vadd.s32 %v102, %v182
    %v199 = vadd.s32 %v103, %v183
    %v200 = vadd.s32 %v104, %v184
    %v201 = vadd.s32 %v105, %v185
    %v202 = vadd.s32 %v106, %v186
    %v203 = vadd.s32 %v107, %v187
    %v204 = vadd.s32 %v108, %v188
    %v205 = vadd.s32 %v109, %v189
    %v206 = vadd.s32 %v110, %v190
    %v207 = vadd.s32 %v111, %v191
    %v208 = vadd.s32 %v112, %v192
    %v209 = vadd.s32 %v113, %v193
    %v210 = vadd.s32 %v114, %v194
    %v211 = vadd.s32 %v115, %v195
    %212 = vset.pattern.permute.xlu0 2
    %213 = vperm.xlu0 %212, %v18
    %v214 = vpop.permute.xlu0 %213
    %215 = vset.pattern.permute.xlu0 2
    %216 = vperm.xlu0 %215, %v19
    %v217 = vpop.permute.xlu0 %216
    %218 = vset.pattern.permute.xlu0 2
    %219 = vperm.xlu0 %218, %v20
    %v220 = vpop.permute.xlu0 %219
    %221 = vset.pattern.permute.xlu0 2
    %222 = vperm.xlu0 %221, %v21
    %v223 = vpop.permute.xlu0 %222
    %224 = vset.pattern.permute.xlu0 2
    %225 = vperm.xlu0 %224, %v22
    %v226 = vpop.permute.xlu0 %225
    %227 = vset.pattern.permute.xlu0 2
    %228 = vperm.xlu0 %227, %v23
    %v229 = vpop.permute.xlu0 %228
    %230 = vset.pattern.permute.xlu0 2
    %231 = vperm.xlu0 %230, %v24
    %v232 = vpop.permute.xlu0 %231
    %233 = vset.pattern.permute.xlu0 2
    %234 = vperm.xlu0 %233, %v25
    %v235 = vpop.permute.xlu0 %234
    %236 = vset.pattern.permute.xlu0 2
    %237 = vperm.xlu0 %236, %v26
    %v238 = vpop.permute.xlu0 %237
    %239 = vset.pattern.permute.xlu0 2
    %240 = vperm.xlu0 %239, %v27
    %v241 = vpop.permute.xlu0 %240
    %242 = vset.pattern.permute.xlu0 2
    %243 = vperm.xlu0 %242, %v28
    %v244 = vpop.permute.xlu0 %243
    %245 = vset.pattern.permute.xlu0 2
    %246 = vperm.xlu0 %245, %v29
    %v247 = vpop.permute.xlu0 %246
    %248 = vset.pattern.permute.xlu0 2
    %249 = vperm.xlu0 %248, %v30
    %v250 = vpop.permute.xlu0 %249
    %251 = vset.pattern.permute.xlu0 2
    %252 = vperm.xlu0 %251, %v31
    %v253 = vpop.permute.xlu0 %252
    %254 = vset.pattern.permute.xlu0 2
    %255 = vperm.xlu0 %254, %v32
    %v256 = vpop.permute.xlu0 %255
    %257 = vset.pattern.permute.xlu0 2
    %258 = vperm.xlu0 %257, %v33
    %v259 = vpop.permute.xlu0 %258
    %vm260 = vcmp.eq.s32.totalorder %v214, %v35
    %vm261 = vcmp.eq.s32.totalorder %v217, %v35
    %vm262 = vcmp.eq.s32.totalorder %v220, %v35
    %vm263 = vcmp.eq.s32.totalorder %v223, %v35
    %vm264 = vcmp.eq.s32.totalorder %v226, %v35
    %vm265 = vcmp.eq.s32.totalorder %v229, %v35
    %vm266 = vcmp.eq.s32.totalorder %v232, %v35
    %vm267 = vcmp.eq.s32.totalorder %v235, %v35
    %vm268 = vcmp.eq.s32.totalorder %v238, %v35
    %vm269 = vcmp.eq.s32.totalorder %v241, %v35
    %vm270 = vcmp.eq.s32.totalorder %v244, %v35
    %vm271 = vcmp.eq.s32.totalorder %v247, %v35
    %vm272 = vcmp.eq.s32.totalorder %v250, %v35
    %vm273 = vcmp.eq.s32.totalorder %v253, %v35
    %vm274 = vcmp.eq.s32.totalorder %v256, %v35
    %vm275 = vcmp.eq.s32.totalorder %v259, %v35
    %v276 = vsel %vm260, 1, 0
    %v277 = vsel %vm261, 1, 0
    %v278 = vsel %vm262, 1, 0
    %v279 = vsel %vm263, 1, 0
    %v280 = vsel %vm264, 1, 0
    %v281 = vsel %vm265, 1, 0
    %v282 = vsel %vm266, 1, 0
    %v283 = vsel %vm267, 1, 0
    %v284 = vsel %vm268, 1, 0
    %v285 = vsel %vm269, 1, 0
    %v286 = vsel %vm270, 1, 0
    %v287 = vsel %vm271, 1, 0
    %v288 = vsel %vm272, 1, 0
    %v289 = vsel %vm273, 1, 0
    %v290 = vsel %vm274, 1, 0
    %v291 = vsel %vm275, 1, 0
    %v292 = vadd.s32 %v196, %v276
    %v293 = vadd.s32 %v197, %v277
    %v294 = vadd.s32 %v198, %v278
    %v295 = vadd.s32 %v199, %v279
    %v296 = vadd.s32 %v200, %v280
    %v297 = vadd.s32 %v201, %v281
    %v298 = vadd.s32 %v202, %v282
    %v299 = vadd.s32 %v203, %v283
    %v300 = vadd.s32 %v204, %v284
    %v301 = vadd.s32 %v205, %v285
    %v302 = vadd.s32 %v206, %v286
    %v303 = vadd.s32 %v207, %v287
    %v304 = vadd.s32 %v208, %v288
    %v305 = vadd.s32 %v209, %v289
    %v306 = vadd.s32 %v210, %v290
    %v307 = vadd.s32 %v211, %v291
    %308 = vset.pattern.permute.xlu0 3
    %309 = vperm.xlu0 %308, %v18
    %v310 = vpop.permute.xlu0 %309
    %311 = vset.pattern.permute.xlu0 3
    %312 = vperm.xlu0 %311, %v19
    %v313 = vpop.permute.xlu0 %312
    %314 = vset.pattern.permute.xlu0 3
    %315 = vperm.xlu0 %314, %v20
    %v316 = vpop.permute.xlu0 %315
    %317 = vset.pattern.permute.xlu0 3
    %318 = vperm.xlu0 %317, %v21
    %v319 = vpop.permute.xlu0 %318
    %320 = vset.pattern.permute.xlu0 3
    %321 = vperm.xlu0 %320, %v22
    %v322 = vpop.permute.xlu0 %321
    %323 = vset.pattern.permute.xlu0 3
    %324 = vperm.xlu0 %323, %v23
    %v325 = vpop.permute.xlu0 %324
    %326 = vset.pattern.permute.xlu0 3
    %327 = vperm.xlu0 %326, %v24
    %v328 = vpop.permute.xlu0 %327
    %329 = vset.pattern.permute.xlu0 3
    %330 = vperm.xlu0 %329, %v25
    %v331 = vpop.permute.xlu0 %330
    %332 = vset.pattern.permute.xlu0 3
    %333 = vperm.xlu0 %332, %v26
    %v334 = vpop.permute.xlu0 %333
    %335 = vset.pattern.permute.xlu0 3
    %336 = vperm.xlu0 %335, %v27
    %v337 = vpop.permute.xlu0 %336
    %338 = vset.pattern.permute.xlu0 3
    %339 = vperm.xlu0 %338, %v28
    %v340 = vpop.permute.xlu0 %339
    %341 = vset.pattern.permute.xlu0 3
    %342 = vperm.xlu0 %341, %v29
    %v343 = vpop.permute.xlu0 %342
    %344 = vset.pattern.permute.xlu0 3
    %345 = vperm.xlu0 %344, %v30
    %v346 = vpop.permute.xlu0 %345
    %347 = vset.pattern.permute.xlu0 3
    %348 = vperm.xlu0 %347, %v31
    %v349 = vpop.permute.xlu0 %348
    %350 = vset.pattern.permute.xlu0 3
    %351 = vperm.xlu0 %350, %v32
    %v352 = vpop.permute.xlu0 %351
    %353 = vset.pattern.permute.xlu0 3
    %354 = vperm.xlu0 %353, %v33
    %v355 = vpop.permute.xlu0 %354
    %vm356 = vcmp.eq.s32.totalorder %v310, %v35
    %vm357 = vcmp.eq.s32.totalorder %v313, %v35
    %vm358 = vcmp.eq.s32.totalorder %v316, %v35
    %vm359 = vcmp.eq.s32.totalorder %v319, %v35
    %vm360 = vcmp.eq.s32.totalorder %v322, %v35
    %vm361 = vcmp.eq.s32.totalorder %v325, %v35
    %vm362 = vcmp.eq.s32.totalorder %v328, %v35
    %vm363 = vcmp.eq.s32.totalorder %v331, %v35
    %vm364 = vcmp.eq.s32.totalorder %v334, %v35
    %vm365 = vcmp.eq.s32.totalorder %v337, %v35
    %vm366 = vcmp.eq.s32.totalorder %v340, %v35
    %vm367 = vcmp.eq.s32.totalorder %v343, %v35
    %vm368 = vcmp.eq.s32.totalorder %v346, %v35
    %vm369 = vcmp.eq.s32.totalorder %v349, %v35
    %vm370 = vcmp.eq.s32.totalorder %v352, %v35
    %vm371 = vcmp.eq.s32.totalorder %v355, %v35
    %v372 = vsel %vm356, 1, 0
    %v373 = vsel %vm357, 1, 0
    %v374 = vsel %vm358, 1, 0
    %v375 = vsel %vm359, 1, 0
    %v376 = vsel %vm360, 1, 0
    %v377 = vsel %vm361, 1, 0
    %v378 = vsel %vm362, 1, 0
    %v379 = vsel %vm363, 1, 0
    %v380 = vsel %vm364, 1, 0
    %v381 = vsel %vm365, 1, 0
    %v382 = vsel %vm366, 1, 0
    %v383 = vsel %vm367, 1, 0
    %v384 = vsel %vm368, 1, 0
    %v385 = vsel %vm369, 1, 0
    %v386 = vsel %vm370, 1, 0
    %v387 = vsel %vm371, 1, 0
    %v388 = vadd.s32 %v292, %v372
    %v389 = vadd.s32 %v293, %v373
    %v390 = vadd.s32 %v294, %v374
    %v391 = vadd.s32 %v295, %v375
    %v392 = vadd.s32 %v296, %v376
    %v393 = vadd.s32 %v297, %v377
    %v394 = vadd.s32 %v298, %v378
    %v395 = vadd.s32 %v299, %v379
    %v396 = vadd.s32 %v300, %v380
    %v397 = vadd.s32 %v301, %v381
    %v398 = vadd.s32 %v302, %v382
    %v399 = vadd.s32 %v303, %v383
    %v400 = vadd.s32 %v304, %v384
    %v401 = vadd.s32 %v305, %v385
    %v402 = vadd.s32 %v306, %v386
    %v403 = vadd.s32 %v307, %v387
    %404 = vset.pattern.permute.xlu0 4
    %405 = vperm.xlu0 %404, %v18
    %v406 = vpop.permute.xlu0 %405
    %407 = vset.pattern.permute.xlu0 4
    %408 = vperm.xlu0 %407, %v19
    %v409 = vpop.permute.xlu0 %408
    %410 = vset.pattern.permute.xlu0 4
    %411 = vperm.xlu0 %410, %v20
    %v412 = vpop.permute.xlu0 %411
    %413 = vset.pattern.permute.xlu0 4
    %414 = vperm.xlu0 %413, %v21
    %v415 = vpop.permute.xlu0 %414
    %416 = vset.pattern.permute.xlu0 4
    %417 = vperm.xlu0 %416, %v22
    %v418 = vpop.permute.xlu0 %417
    %419 = vset.pattern.permute.xlu0 4
    %420 = vperm.xlu0 %419, %v23
    %v421 = vpop.permute.xlu0 %420
    %422 = vset.pattern.permute.xlu0 4
    %423 = vperm.xlu0 %422, %v24
    %v424 = vpop.permute.xlu0 %423
    %425 = vset.pattern.permute.xlu0 4
    %426 = vperm.xlu0 %425, %v25
    %v427 = vpop.permute.xlu0 %426
    %428 = vset.pattern.permute.xlu0 4
    %429 = vperm.xlu0 %428, %v26
    %v430 = vpop.permute.xlu0 %429
    %431 = vset.pattern.permute.xlu0 4
    %432 = vperm.xlu0 %431, %v27
    %v433 = vpop.permute.xlu0 %432
    %434 = vset.pattern.permute.xlu0 4
    %435 = vperm.xlu0 %434, %v28
    %v436 = vpop.permute.xlu0 %435
    %437 = vset.pattern.permute.xlu0 4
    %438 = vperm.xlu0 %437, %v29
    %v439 = vpop.permute.xlu0 %438
    %440 = vset.pattern.permute.xlu0 4
    %441 = vperm.xlu0 %440, %v30
    %v442 = vpop.permute.xlu0 %441
    %443 = vset.pattern.permute.xlu0 4
    %444 = vperm.xlu0 %443, %v31
    %v445 = vpop.permute.xlu0 %444
    %446 = vset.pattern.permute.xlu0 4
    %447 = vperm.xlu0 %446, %v32
    %v448 = vpop.permute.xlu0 %447
    %449 = vset.pattern.permute.xlu0 4
    %450 = vperm.xlu0 %449, %v33
    %v451 = vpop.permute.xlu0 %450
    %vm452 = vcmp.eq.s32.totalorder %v406, %v35
    %vm453 = vcmp.eq.s32.totalorder %v409, %v35
    %vm454 = vcmp.eq.s32.totalorder %v412, %v35
    %vm455 = vcmp.eq.s32.totalorder %v415, %v35
    %vm456 = vcmp.eq.s32.totalorder %v418, %v35
    %vm457 = vcmp.eq.s32.totalorder %v421, %v35
    %vm458 = vcmp.eq.s32.totalorder %v424, %v35
    %vm459 = vcmp.eq.s32.totalorder %v427, %v35
    %vm460 = vcmp.eq.s32.totalorder %v430, %v35
    %vm461 = vcmp.eq.s32.totalorder %v433, %v35
    %vm462 = vcmp.eq.s32.totalorder %v436, %v35
    %vm463 = vcmp.eq.s32.totalorder %v439, %v35
    %vm464 = vcmp.eq.s32.totalorder %v442, %v35
    %vm465 = vcmp.eq.s32.totalorder %v445, %v35
    %vm466 = vcmp.eq.s32.totalorder %v448, %v35
    %vm467 = vcmp.eq.s32.totalorder %v451, %v35
    %v468 = vsel %vm452, 1, 0
    %v469 = vsel %vm453, 1, 0
    %v470 = vsel %vm454, 1, 0
    %v471 = vsel %vm455, 1, 0
    %v472 = vsel %vm456, 1, 0
    %v473 = vsel %vm457, 1, 0
    %v474 = vsel %vm458, 1, 0
    %v475 = vsel %vm459, 1, 0
    %v476 = vsel %vm460, 1, 0
    %v477 = vsel %vm461, 1, 0
    %v478 = vsel %vm462, 1, 0
    %v479 = vsel %vm463, 1, 0
    %v480 = vsel %vm464, 1, 0
    %v481 = vsel %vm465, 1, 0
    %v482 = vsel %vm466, 1, 0
    %v483 = vsel %vm467, 1, 0
    %v484 = vadd.s32 %v388, %v468
    %v485 = vadd.s32 %v389, %v469
    %v486 = vadd.s32 %v390, %v470
    %v487 = vadd.s32 %v391, %v471
    %v488 = vadd.s32 %v392, %v472
    %v489 = vadd.s32 %v393, %v473
    %v490 = vadd.s32 %v394, %v474
    %v491 = vadd.s32 %v395, %v475
    %v492 = vadd.s32 %v396, %v476
    %v493 = vadd.s32 %v397, %v477
    %v494 = vadd.s32 %v398, %v478
    %v495 = vadd.s32 %v399, %v479
    %v496 = vadd.s32 %v400, %v480
    %v497 = vadd.s32 %v401, %v481
    %v498 = vadd.s32 %v402, %v482
    %v499 = vadd.s32 %v403, %v483
    %500 = vset.pattern.permute.xlu0 5
    %501 = vperm.xlu0 %500, %v18
    %v502 = vpop.permute.xlu0 %501
    %503 = vset.pattern.permute.xlu0 5
    %504 = vperm.xlu0 %503, %v19
    %v505 = vpop.permute.xlu0 %504
    %506 = vset.pattern.permute.xlu0 5
    %507 = vperm.xlu0 %506, %v20
    %v508 = vpop.permute.xlu0 %507
    %509 = vset.pattern.permute.xlu0 5
    %510 = vperm.xlu0 %509, %v21
    %v511 = vpop.permute.xlu0 %510
    %512 = vset.pattern.permute.xlu0 5
    %513 = vperm.xlu0 %512, %v22
    %v514 = vpop.permute.xlu0 %513
    %515 = vset.pattern.permute.xlu0 5
    %516 = vperm.xlu0 %515, %v23
    %v517 = vpop.permute.xlu0 %516
    %518 = vset.pattern.permute.xlu0 5
    %519 = vperm.xlu0 %518, %v24
    %v520 = vpop.permute.xlu0 %519
    %521 = vset.pattern.permute.xlu0 5
    %522 = vperm.xlu0 %521, %v25
    %v523 = vpop.permute.xlu0 %522
    %524 = vset.pattern.permute.xlu0 5
    %525 = vperm.xlu0 %524, %v26
    %v526 = vpop.permute.xlu0 %525
    %527 = vset.pattern.permute.xlu0 5
    %528 = vperm.xlu0 %527, %v27
    %v529 = vpop.permute.xlu0 %528
    %530 = vset.pattern.permute.xlu0 5
    %531 = vperm.xlu0 %530, %v28
    %v532 = vpop.permute.xlu0 %531
    %533 = vset.pattern.permute.xlu0 5
    %534 = vperm.xlu0 %533, %v29
    %v535 = vpop.permute.xlu0 %534
    %536 = vset.pattern.permute.xlu0 5
    %537 = vperm.xlu0 %536, %v30
    %v538 = vpop.permute.xlu0 %537
    %539 = vset.pattern.permute.xlu0 5
    %540 = vperm.xlu0 %539, %v31
    %v541 = vpop.permute.xlu0 %540
    %542 = vset.pattern.permute.xlu0 5
    %543 = vperm.xlu0 %542, %v32
    %v544 = vpop.permute.xlu0 %543
    %545 = vset.pattern.permute.xlu0 5
    %546 = vperm.xlu0 %545, %v33
    %v547 = vpop.permute.xlu0 %546
    %vm548 = vcmp.eq.s32.totalorder %v502, %v35
    %vm549 = vcmp.eq.s32.totalorder %v505, %v35
    %vm550 = vcmp.eq.s32.totalorder %v508, %v35
    %vm551 = vcmp.eq.s32.totalorder %v511, %v35
    %vm552 = vcmp.eq.s32.totalorder %v514, %v35
    %vm553 = vcmp.eq.s32.totalorder %v517, %v35
    %vm554 = vcmp.eq.s32.totalorder %v520, %v35
    %vm555 = vcmp.eq.s32.totalorder %v523, %v35
    %vm556 = vcmp.eq.s32.totalorder %v526, %v35
    %vm557 = vcmp.eq.s32.totalorder %v529, %v35
    %vm558 = vcmp.eq.s32.totalorder %v532, %v35
    %vm559 = vcmp.eq.s32.totalorder %v535, %v35
    %vm560 = vcmp.eq.s32.totalorder %v538, %v35
    %vm561 = vcmp.eq.s32.totalorder %v541, %v35
    %vm562 = vcmp.eq.s32.totalorder %v544, %v35
    %vm563 = vcmp.eq.s32.totalorder %v547, %v35
    %v564 = vsel %vm548, 1, 0
    %v565 = vsel %vm549, 1, 0
    %v566 = vsel %vm550, 1, 0
    %v567 = vsel %vm551, 1, 0
    %v568 = vsel %vm552, 1, 0
    %v569 = vsel %vm553, 1, 0
    %v570 = vsel %vm554, 1, 0
    %v571 = vsel %vm555, 1, 0
    %v572 = vsel %vm556, 1, 0
    %v573 = vsel %vm557, 1, 0
    %v574 = vsel %vm558, 1, 0
    %v575 = vsel %vm559, 1, 0
    %v576 = vsel %vm560, 1, 0
    %v577 = vsel %vm561, 1, 0
    %v578 = vsel %vm562, 1, 0
    %v579 = vsel %vm563, 1, 0
    %v580 = vadd.s32 %v484, %v564
    %v581 = vadd.s32 %v485, %v565
    %v582 = vadd.s32 %v486, %v566
    %v583 = vadd.s32 %v487, %v567
    %v584 = vadd.s32 %v488, %v568
    %v585 = vadd.s32 %v489, %v569
    %v586 = vadd.s32 %v490, %v570
    %v587 = vadd.s32 %v491, %v571
    %v588 = vadd.s32 %v492, %v572
    %v589 = vadd.s32 %v493, %v573
    %v590 = vadd.s32 %v494, %v574
    %v591 = vadd.s32 %v495, %v575
    %v592 = vadd.s32 %v496, %v576
    %v593 = vadd.s32 %v497, %v577
    %v594 = vadd.s32 %v498, %v578
    %v595 = vadd.s32 %v499, %v579
    %596 = vset.pattern.permute.xlu0 6
    %597 = vperm.xlu0 %596, %v18
    %v598 = vpop.permute.xlu0 %597
    %599 = vset.pattern.permute.xlu0 6
    %600 = vperm.xlu0 %599, %v19
    %v601 = vpop.permute.xlu0 %600
    %602 = vset.pattern.permute.xlu0 6
    %603 = vperm.xlu0 %602, %v20
    %v604 = vpop.permute.xlu0 %603
    %605 = vset.pattern.permute.xlu0 6
    %606 = vperm.xlu0 %605, %v21
    %v607 = vpop.permute.xlu0 %606
    %608 = vset.pattern.permute.xlu0 6
    %609 = vperm.xlu0 %608, %v22
    %v610 = vpop.permute.xlu0 %609
    %611 = vset.pattern.permute.xlu0 6
    %612 = vperm.xlu0 %611, %v23
    %v613 = vpop.permute.xlu0 %612
    %614 = vset.pattern.permute.xlu0 6
    %615 = vperm.xlu0 %614, %v24
    %v616 = vpop.permute.xlu0 %615
    %617 = vset.pattern.permute.xlu0 6
    %618 = vperm.xlu0 %617, %v25
    %v619 = vpop.permute.xlu0 %618
    %620 = vset.pattern.permute.xlu0 6
    %621 = vperm.xlu0 %620, %v26
    %v622 = vpop.permute.xlu0 %621
    %623 = vset.pattern.permute.xlu0 6
    %624 = vperm.xlu0 %623, %v27
    %v625 = vpop.permute.xlu0 %624
    %626 = vset.pattern.permute.xlu0 6
    %627 = vperm.xlu0 %626, %v28
    %v628 = vpop.permute.xlu0 %627
    %629 = vset.pattern.permute.xlu0 6
    %630 = vperm.xlu0 %629, %v29
    %v631 = vpop.permute.xlu0 %630
    %632 = vset.pattern.permute.xlu0 6
    %633 = vperm.xlu0 %632, %v30
    %v634 = vpop.permute.xlu0 %633
    %635 = vset.pattern.permute.xlu0 6
    %636 = vperm.xlu0 %635, %v31
    %v637 = vpop.permute.xlu0 %636
    %638 = vset.pattern.permute.xlu0 6
    %639 = vperm.xlu0 %638, %v32
    %v640 = vpop.permute.xlu0 %639
    %641 = vset.pattern.permute.xlu0 6
    %642 = vperm.xlu0 %641, %v33
    %v643 = vpop.permute.xlu0 %642
    %vm644 = vcmp.eq.s32.totalorder %v598, %v35
    %vm645 = vcmp.eq.s32.totalorder %v601, %v35
    %vm646 = vcmp.eq.s32.totalorder %v604, %v35
    %vm647 = vcmp.eq.s32.totalorder %v607, %v35
    %vm648 = vcmp.eq.s32.totalorder %v610, %v35
    %vm649 = vcmp.eq.s32.totalorder %v613, %v35
    %vm650 = vcmp.eq.s32.totalorder %v616, %v35
    %vm651 = vcmp.eq.s32.totalorder %v619, %v35
    %vm652 = vcmp.eq.s32.totalorder %v622, %v35
    %vm653 = vcmp.eq.s32.totalorder %v625, %v35
    %vm654 = vcmp.eq.s32.totalorder %v628, %v35
    %vm655 = vcmp.eq.s32.totalorder %v631, %v35
    %vm656 = vcmp.eq.s32.totalorder %v634, %v35
    %vm657 = vcmp.eq.s32.totalorder %v637, %v35
    %vm658 = vcmp.eq.s32.totalorder %v640, %v35
    %vm659 = vcmp.eq.s32.totalorder %v643, %v35
    %v660 = vsel %vm644, 1, 0
    %v661 = vsel %vm645, 1, 0
    %v662 = vsel %vm646, 1, 0
    %v663 = vsel %vm647, 1, 0
    %v664 = vsel %vm648, 1, 0
    %v665 = vsel %vm649, 1, 0
    %v666 = vsel %vm650, 1, 0
    %v667 = vsel %vm651, 1, 0
    %v668 = vsel %vm652, 1, 0
    %v669 = vsel %vm653, 1, 0
    %v670 = vsel %vm654, 1, 0
    %v671 = vsel %vm655, 1, 0
    %v672 = vsel %vm656, 1, 0
    %v673 = vsel %vm657, 1, 0
    %v674 = vsel %vm658, 1, 0
    %v675 = vsel %vm659, 1, 0
    %v676 = vadd.s32 %v580, %v660
    %v677 = vadd.s32 %v581, %v661
    %v678 = vadd.s32 %v582, %v662
    %v679 = vadd.s32 %v583, %v663
    %v680 = vadd.s32 %v584, %v664
    %v681 = vadd.s32 %v585, %v665
    %v682 = vadd.s32 %v586, %v666
    %v683 = vadd.s32 %v587, %v667
    %v684 = vadd.s32 %v588, %v668
    %v685 = vadd.s32 %v589, %v669
    %v686 = vadd.s32 %v590, %v670
    %v687 = vadd.s32 %v591, %v671
    %v688 = vadd.s32 %v592, %v672
    %v689 = vadd.s32 %v593, %v673
    %v690 = vadd.s32 %v594, %v674
    %v691 = vadd.s32 %v595, %v675
    %692 = vset.pattern.permute.xlu0 7
    %693 = vperm.xlu0 %692, %v18
    %v694 = vpop.permute.xlu0 %693
    %695 = vset.pattern.permute.xlu0 7
    %696 = vperm.xlu0 %695, %v19
    %v697 = vpop.permute.xlu0 %696
    %698 = vset.pattern.permute.xlu0 7
    %699 = vperm.xlu0 %698, %v20
    %v700 = vpop.permute.xlu0 %699
    %701 = vset.pattern.permute.xlu0 7
    %702 = vperm.xlu0 %701, %v21
    %v703 = vpop.permute.xlu0 %702
    %704 = vset.pattern.permute.xlu0 7
    %705 = vperm.xlu0 %704, %v22
    %v706 = vpop.permute.xlu0 %705
    %707 = vset.pattern.permute.xlu0 7
    %708 = vperm.xlu0 %707, %v23
    %v709 = vpop.permute.xlu0 %708
    %710 = vset.pattern.permute.xlu0 7
    %711 = vperm.xlu0 %710, %v24
    %v712 = vpop.permute.xlu0 %711
    %713 = vset.pattern.permute.xlu0 7
    %714 = vperm.xlu0 %713, %v25
    %v715 = vpop.permute.xlu0 %714
    %716 = vset.pattern.permute.xlu0 7
    %717 = vperm.xlu0 %716, %v26
    %v718 = vpop.permute.xlu0 %717
    %719 = vset.pattern.permute.xlu0 7
    %720 = vperm.xlu0 %719, %v27
    %v721 = vpop.permute.xlu0 %720
    %722 = vset.pattern.permute.xlu0 7
    %723 = vperm.xlu0 %722, %v28
    %v724 = vpop.permute.xlu0 %723
    %725 = vset.pattern.permute.xlu0 7
    %726 = vperm.xlu0 %725, %v29
    %v727 = vpop.permute.xlu0 %726
    %728 = vset.pattern.permute.xlu0 7
    %729 = vperm.xlu0 %728, %v30
    %v730 = vpop.permute.xlu0 %729
    %731 = vset.pattern.permute.xlu0 7
    %732 = vperm.xlu0 %731, %v31
    %v733 = vpop.permute.xlu0 %732
    %734 = vset.pattern.permute.xlu0 7
    %735 = vperm.xlu0 %734, %v32
    %v736 = vpop.permute.xlu0 %735
    %737 = vset.pattern.permute.xlu0 7
    %738 = vperm.xlu0 %737, %v33
    %v739 = vpop.permute.xlu0 %738
    %vm740 = vcmp.eq.s32.totalorder %v694, %v35
    %vm741 = vcmp.eq.s32.totalorder %v697, %v35
    %vm742 = vcmp.eq.s32.totalorder %v700, %v35
    %vm743 = vcmp.eq.s32.totalorder %v703, %v35
    %vm744 = vcmp.eq.s32.totalorder %v706, %v35
    %vm745 = vcmp.eq.s32.totalorder %v709, %v35
    %vm746 = vcmp.eq.s32.totalorder %v712, %v35
    %vm747 = vcmp.eq.s32.totalorder %v715, %v35
    %vm748 = vcmp.eq.s32.totalorder %v718, %v35
    %vm749 = vcmp.eq.s32.totalorder %v721, %v35
    %vm750 = vcmp.eq.s32.totalorder %v724, %v35
    %vm751 = vcmp.eq.s32.totalorder %v727, %v35
    %vm752 = vcmp.eq.s32.totalorder %v730, %v35
    %vm753 = vcmp.eq.s32.totalorder %v733, %v35
    %vm754 = vcmp.eq.s32.totalorder %v736, %v35
    %vm755 = vcmp.eq.s32.totalorder %v739, %v35
    %v756 = vsel %vm740, 1, 0
    %v757 = vsel %vm741, 1, 0
    %v758 = vsel %vm742, 1, 0
    %v759 = vsel %vm743, 1, 0
    %v760 = vsel %vm744, 1, 0
    %v761 = vsel %vm745, 1, 0
    %v762 = vsel %vm746, 1, 0
    %v763 = vsel %vm747, 1, 0
    %v764 = vsel %vm748, 1, 0
    %v765 = vsel %vm749, 1, 0
    %v766 = vsel %vm750, 1, 0
    %v767 = vsel %vm751, 1, 0
    %v768 = vsel %vm752, 1, 0
    %v769 = vsel %vm753, 1, 0
    %v770 = vsel %vm754, 1, 0
    %v771 = vsel %vm755, 1, 0
    %v772 = vadd.s32 %v676, %v756
    %v773 = vadd.s32 %v677, %v757
    %v774 = vadd.s32 %v678, %v758
    %v775 = vadd.s32 %v679, %v759
    %v776 = vadd.s32 %v680, %v760
    %v777 = vadd.s32 %v681, %v761
    %v778 = vadd.s32 %v682, %v762
    %v779 = vadd.s32 %v683, %v763
    %v780 = vadd.s32 %v684, %v764
    %v781 = vadd.s32 %v685, %v765
    %v782 = vadd.s32 %v686, %v766
    %v783 = vadd.s32 %v687, %v767
    %v784 = vadd.s32 %v688, %v768
    %v785 = vadd.s32 %v689, %v769
    %v786 = vadd.s32 %v690, %v770
    %v787 = vadd.s32 %v691, %v771
    %v788 = vcvt.s32.f32 %v772
    %v789 = vcvt.s32.f32 %v773
    %v790 = vcvt.s32.f32 %v774
    %v791 = vcvt.s32.f32 %v775
    %v792 = vcvt.s32.f32 %v776
    %v793 = vcvt.s32.f32 %v777
    %v794 = vcvt.s32.f32 %v778
    %v795 = vcvt.s32.f32 %v779
    %v796 = vcvt.s32.f32 %v780
    %v797 = vcvt.s32.f32 %v781
    %v798 = vcvt.s32.f32 %v782
    %v799 = vcvt.s32.f32 %v783
    %v800 = vcvt.s32.f32 %v784
    %v801 = vcvt.s32.f32 %v785
    %v802 = vcvt.s32.f32 %v786
    %v803 = vcvt.s32.f32 %v787
    %v804 = vld [vmem:[%s1] sm:$0xff]
    %v805 = vld [vmem:[%s1 + $0x8] sm:$0xff]
    %v806 = vld [vmem:[%s1 + $0x10] sm:$0xff]
    %v807 = vld [vmem:[%s1 + $0x18] sm:$0xff]
    %v808 = vld [vmem:[%s1 + $0x20] sm:$0xff]
    %v809 = vld [vmem:[%s1 + $0x28] sm:$0xff]
    %v810 = vld [vmem:[%s1 + $0x30] sm:$0xff]
    %v811 = vld [vmem:[%s1 + $0x38] sm:$0xff]
    %v812 = vld [vmem:[%s1 + $0x40] sm:$0xff]
    %v813 = vld [vmem:[%s1 + $0x48] sm:$0xff]
    %v814 = vld [vmem:[%s1 + $0x50] sm:$0xff]
    %v815 = vld [vmem:[%s1 + $0x58] sm:$0xff]
    %v816 = vld [vmem:[%s1 + $0x60] sm:$0xff]
    %v817 = vld [vmem:[%s1 + $0x68] sm:$0xff]
    %v818 = vld [vmem:[%s1 + $0x70] sm:$0xff]
    %v819 = vld [vmem:[%s1 + $0x78] sm:$0xff]
    %820 = vmatprep.subr.mxu0 0.0
    %821 = vmatpush1.msra.mxu0 %v819
    %822 = vmatprep.subr.mxu0 0.0
    %823 = vmatpush1.msra.mxu0 %v818
    %824 = vmatprep.subr.mxu0 0.0
    %825 = vmatpush1.msra.mxu0 %v817
    %826 = vmatprep.subr.mxu0 0.0
    %827 = vmatpush1.msra.mxu0 %v816
    %828 = vmatprep.subr.mxu0 0.0
    %829 = vmatpush1.msra.mxu0 %v815
    %830 = vmatprep.subr.mxu0 0.0
    %831 = vmatpush1.msra.mxu0 %v814
    %832 = vmatprep.subr.mxu0 0.0
    %833 = vmatpush1.msra.mxu0 %v813
    %834 = vmatprep.subr.mxu0 0.0
    %835 = vmatpush1.msra.mxu0 %v812
    %836 = vmatprep.subr.mxu0 0.0
    %837 = vmatpush1.msra.mxu0 %v811
    %838 = vmatprep.subr.mxu0 0.0
    %839 = vmatpush1.msra.mxu0 %v810
    %840 = vmatprep.subr.mxu0 0.0
    %841 = vmatpush1.msra.mxu0 %v809
    %842 = vmatprep.subr.mxu0 0.0
    %843 = vmatpush1.msra.mxu0 %v808
    %844 = vmatprep.subr.mxu0 0.0
    %845 = vmatpush1.msra.mxu0 %v807
    %846 = vmatprep.subr.mxu0 0.0
    %847 = vmatpush1.msra.mxu0 %v806
    %848 = vmatprep.subr.mxu0 0.0
    %849 = vmatpush1.msra.mxu0 %v805
    %850 = vmatprep.subr.mxu0 0.0
    %851 = vmatpush1.msra.mxu0 %v804
    %852 = vmatprep.subr.mxu0 0.0
    %853 = vmatpush2.msra.mxu0 0.0
    %854 = vmatprep.subr.mxu0 0.0
    %855 = vmatpush2.msra.mxu0 0.0
    %856 = vmatprep.subr.mxu0 0.0
    %857 = vmatpush2.msra.mxu0 0.0
    %858 = vmatprep.subr.mxu0 0.0
    %859 = vmatpush2.msra.mxu0 0.0
    %860 = vmatprep.subr.mxu0 0.0
    %861 = vmatpush2.msra.mxu0 0.0
    %862 = vmatprep.subr.mxu0 0.0
    %863 = vmatpush2.msra.mxu0 0.0
    %864 = vmatprep.subr.mxu0 0.0
    %865 = vmatpush2.msra.mxu0 0.0
    %866 = vmatprep.subr.mxu0 0.0
    %867 = vmatpush2.msra.mxu0 0.0
    %868 = vmatprep.subr.mxu0 0.0
    %869 = vmatpush2.msra.mxu0 0.0
    %870 = vmatprep.subr.mxu0 0.0
    %871 = vmatpush2.msra.mxu0 0.0
    %872 = vmatprep.subr.mxu0 0.0
    %873 = vmatpush2.msra.mxu0 0.0
    %874 = vmatprep.subr.mxu0 0.0
    %875 = vmatpush2.msra.mxu0 0.0
    %876 = vmatprep.subr.mxu0 0.0
    %877 = vmatpush2.msra.mxu0 0.0
    %878 = vmatprep.subr.mxu0 0.0
    %879 = vmatpush2.msra.mxu0 0.0
    %880 = vmatprep.subr.mxu0 0.0
    %881 = vmatpush2.msra.mxu0 0.0
    %882 = vmatprep.subr.mxu0 0.0
    %883 = vmatpush2.msra.mxu0 0.0
    %884 = vmatprep.mubr.f32.mxu0 0.0
    %885 = vmatmul.mubr.f32.gmra.mxu0 %v788
    %v886 = vpop.f32.mrf.mxu0
    %v887 = vadd.f32 0.0, %v886
    %v888 = vpop.f32.mrf.mxu0
    %889 = vmatprep.mubr.f32.mxu0 0.0
    %890 = vmatmul.mubr.f32.gmra.mxu0 %v789
    %v891 = vpop.f32.mrf.mxu0
    %v892 = vadd.f32 0.0, %v891
    %v893 = vpop.f32.mrf.mxu0
    %894 = vmatprep.mubr.f32.mxu0 0.0
    %895 = vmatmul.mubr.f32.gmra.mxu0 %v790
    %v896 = vpop.f32.mrf.mxu0
    %v897 = vadd.f32 0.0, %v896
    %v898 = vpop.f32.mrf.mxu0
    %899 = vmatprep.mubr.f32.mxu0 0.0
    %900 = vmatmul.mubr.f32.gmra.mxu0 %v791
    %v901 = vpop.f32.mrf.mxu0
    %v902 = vadd.f32 0.0, %v901
    %v903 = vpop.f32.mrf.mxu0
    %904 = vmatprep.mubr.f32.mxu0 0.0
    %905 = vmatmul.mubr.f32.gmra.mxu0 %v792
    %v906 = vpop.f32.mrf.mxu0
    %v907 = vadd.f32 0.0, %v906
    %v908 = vpop.f32.mrf.mxu0
    %909 = vmatprep.mubr.f32.mxu0 0.0
    %910 = vmatmul.mubr.f32.gmra.mxu0 %v793
    %v911 = vpop.f32.mrf.mxu0
    %v912 = vadd.f32 0.0, %v911
    %v913 = vpop.f32.mrf.mxu0
    %914 = vmatprep.mubr.f32.mxu0 0.0
    %915 = vmatmul.mubr.f32.gmra.mxu0 %v794
    %v916 = vpop.f32.mrf.mxu0
    %v917 = vadd.f32 0.0, %v916
    %v918 = vpop.f32.mrf.mxu0
    %919 = vmatprep.mubr.f32.mxu0 0.0
    %920 = vmatmul.mubr.f32.gmra.mxu0 %v795
    %v921 = vpop.f32.mrf.mxu0
    %v922 = vadd.f32 0.0, %v921
    %v923 = vpop.f32.mrf.mxu0
    %924 = vmatprep.mubr.f32.mxu0 0.0
    %925 = vmatmul.mubr.f32.gmra.mxu0 %v796
    %v926 = vpop.f32.mrf.mxu0
    %v927 = vadd.f32 0.0, %v926
    %v928 = vpop.f32.mrf.mxu0
    %929 = vmatprep.mubr.f32.mxu0 0.0
    %930 = vmatmul.mubr.f32.gmra.mxu0 %v797
    %v931 = vpop.f32.mrf.mxu0
    %v932 = vadd.f32 0.0, %v931
    %v933 = vpop.f32.mrf.mxu0
    %934 = vmatprep.mubr.f32.mxu0 0.0
    %935 = vmatmul.mubr.f32.gmra.mxu0 %v798
    %v936 = vpop.f32.mrf.mxu0
    %v937 = vadd.f32 0.0, %v936
    %v938 = vpop.f32.mrf.mxu0
    %939 = vmatprep.mubr.f32.mxu0 0.0
    %940 = vmatmul.mubr.f32.gmra.mxu0 %v799
    %v941 = vpop.f32.mrf.mxu0
    %v942 = vadd.f32 0.0, %v941
    %v943 = vpop.f32.mrf.mxu0
    %944 = vmatprep.mubr.f32.mxu0 0.0
    %945 = vmatmul.mubr.f32.gmra.mxu0 %v800
    %v946 = vpop.f32.mrf.mxu0
    %v947 = vadd.f32 0.0, %v946
    %v948 = vpop.f32.mrf.mxu0
    %949 = vmatprep.mubr.f32.mxu0 0.0
    %950 = vmatmul.mubr.f32.gmra.mxu0 %v801
    %v951 = vpop.f32.mrf.mxu0
    %v952 = vadd.f32 0.0, %v951
    %v953 = vpop.f32.mrf.mxu0
    %954 = vmatprep.mubr.f32.mxu0 0.0
    %955 = vmatmul.mubr.f32.gmra.mxu0 %v802
    %v956 = vpop.f32.mrf.mxu0
    %v957 = vadd.f32 0.0, %v956
    %v958 = vpop.f32.mrf.mxu0
    %959 = vmatprep.mubr.f32.mxu0 0.0
    %960 = vmatmul.mubr.f32.gmra.mxu0 %v803
    %v961 = vpop.f32.mrf.mxu0
    %v962 = vadd.f32 0.0, %v961
    %v963 = vpop.f32.mrf.mxu0
    %964 = vdwg.mxu0
    %v965 = vmax.f32 %v887, 0.0
    %v966 = vmax.f32 %v892, 0.0
    %v967 = vmax.f32 %v897, 0.0
    %v968 = vmax.f32 %v902, 0.0
    %v969 = vmax.f32 %v907, 0.0
    %v970 = vmax.f32 %v912, 0.0
    %v971 = vmax.f32 %v917, 0.0
    %v972 = vmax.f32 %v922, 0.0
    %v973 = vmax.f32 %v927, 0.0
    %v974 = vmax.f32 %v932, 0.0
    %v975 = vmax.f32 %v937, 0.0
    %v976 = vmax.f32 %v942, 0.0
    %v977 = vmax.f32 %v947, 0.0
    %v978 = vmax.f32 %v952, 0.0
    %v979 = vmax.f32 %v957, 0.0
    %v980 = vmax.f32 %v962, 0.0
    %v981 = vld [vmem:[%s2] sm:$0xff]
    %v982 = vld [vmem:[%s2 + $0x8] sm:$0xff]
    %v983 = vld [vmem:[%s2 + $0x10] sm:$0xff]
    %v984 = vld [vmem:[%s2 + $0x18] sm:$0xff]
    %v985 = vld [vmem:[%s2 + $0x20] sm:$0xff]
    %v986 = vld [vmem:[%s2 + $0x28] sm:$0xff]
    %v987 = vld [vmem:[%s2 + $0x30] sm:$0xff]
    %v988 = vld [vmem:[%s2 + $0x38] sm:$0xff]
    %v989 = vld [vmem:[%s3] sm:$0x1]
    %v991 = vlaneseq
    %v992 = vshrl.u32 %v991, 7
    %v993 = vsub.s32 0, %v992
    %v994 = vrot.slane %v989, %v993
    %vm996 = vcmask 523264
    %v998 = vsel %vm996, %v965, 0
    %v1001 = vsel %vm996, %v966, 0
    %v1004 = vsel %vm996, %v967, 0
    %v1007 = vsel %vm996, %v968, 0
    %v1010 = vsel %vm996, %v969, 0
    %v1013 = vsel %vm996, %v970, 0
    %v1016 = vsel %vm996, %v971, 0
    %v1019 = vsel %vm996, %v972, 0
    %v1022 = vsel %vm996, %v973, 0
    %v1025 = vsel %vm996, %v974, 0
    %v1028 = vsel %vm996, %v975, 0
    %v1031 = vsel %vm996, %v976, 0
    %v1034 = vsel %vm996, %v977, 0
    %v1037 = vsel %vm996, %v978, 0
    %v1040 = vsel %vm996, %v979, 0
    %v1043 = vsel %vm996, %v980, 0
    %1045 = vmatprep.subr.mxu0 0.0
    %1046 = vmatpush1.msra.mxu0 0.0
    %1047 = vmatprep.subr.mxu0 0.0
    %1048 = vmatpush1.msra.mxu0 0.0
    %1049 = vmatprep.subr.mxu0 0.0
    %1050 = vmatpush1.msra.mxu0 0.0
    %1051 = vmatprep.subr.mxu0 0.0
    %1052 = vmatpush1.msra.mxu0 0.0
    %1053 = vmatprep.subr.mxu0 0.0
    %1054 = vmatpush1.msra.mxu0 0.0
    %1055 = vmatprep.subr.mxu0 0.0
    %1056 = vmatpush1.msra.mxu0 0.0
    %1057 = vmatprep.subr.mxu0 0.0
    %1058 = vmatpush1.msra.mxu0 0.0
    %1059 = vmatprep.subr.mxu0 0.0
    %1060 = vmatpush1.msra.mxu0 0.0
    %1061 = vmatprep.subr.mxu0 0.0
    %1062 = vmatpush1.msra.mxu0 %v988
    %1063 = vmatprep.subr.mxu0 0.0
    %1064 = vmatpush1.msra.mxu0 %v987
    %1065 = vmatprep.subr.mxu0 0.0
    %1066 = vmatpush1.msra.mxu0 %v986
    %1067 = vmatprep.subr.mxu0 0.0
    %1068 = vmatpush1.msra.mxu0 %v985
    %1069 = vmatprep.subr.mxu0 0.0
    %1070 = vmatpush1.msra.mxu0 %v984
    %1071 = vmatprep.subr.mxu0 0.0
    %1072 = vmatpush1.msra.mxu0 %v983
    %1073 = vmatprep.subr.mxu0 0.0
    %1074 = vmatpush1.msra.mxu0 %v982
    %1075 = vmatprep.subr.mxu0 0.0
    %1076 = vmatpush1.msra.mxu0 %v981
    %1077 = vmatprep.subr.mxu0 0.0
    %1078 = vmatpush2.msra.mxu0 0.0
    %1079 = vmatprep.subr.mxu0 0.0
    %1080 = vmatpush2.msra.mxu0 0.0
    %1081 = vmatprep.subr.mxu0 0.0
    %1082 = vmatpush2.msra.mxu0 0.0
    %1083 = vmatprep.subr.mxu0 0.0
    %1084 = vmatpush2.msra.mxu0 0.0
    %1085 = vmatprep.subr.mxu0 0.0
    %1086 = vmatpush2.msra.mxu0 0.0
    %1087 = vmatprep.subr.mxu0 0.0
    %1088 = vmatpush2.msra.mxu0 0.0
    %1089 = vmatprep.subr.mxu0 0.0
    %1090 = vmatpush2.msra.mxu0 0.0
    %1091 = vmatprep.subr.mxu0 0.0
    %1092 = vmatpush2.msra.mxu0 0.0
    %1093 = vmatprep.subr.mxu0 0.0
    %1094 = vmatpush2.msra.mxu0 0.0
    %1095 = vmatprep.subr.mxu0 0.0
    %1096 = vmatpush2.msra.mxu0 0.0
    %1097 = vmatprep.subr.mxu0 0.0
    %1098 = vmatpush2.msra.mxu0 0.0
    %1099 = vmatprep.subr.mxu0 0.0
    %1100 = vmatpush2.msra.mxu0 0.0
    %1101 = vmatprep.subr.mxu0 0.0
    %1102 = vmatpush2.msra.mxu0 0.0
    %1103 = vmatprep.subr.mxu0 0.0
    %1104 = vmatpush2.msra.mxu0 0.0
    %1105 = vmatprep.subr.mxu0 0.0
    %1106 = vmatpush2.msra.mxu0 0.0
    %1107 = vmatprep.subr.mxu0 0.0
    %1108 = vmatpush2.msra.mxu0 0.0
    %1109 = vmatprep.mubr.f32.mxu0 0.0
    %1110 = vmatmul.mubr.f32.gmra.mxu0 %v998
    %v1111 = vpop.f32.mrf.mxu0
    %v1112 = vadd.f32 %v994, %v1111
    %v1113 = vpop.f32.mrf.mxu0
    %1114 = vmatprep.mubr.f32.mxu0 0.0
    %1115 = vmatmul.mubr.f32.gmra.mxu0 %v1001
    %v1116 = vpop.f32.mrf.mxu0
    %v1117 = vadd.f32 %v994, %v1116
    %v1118 = vpop.f32.mrf.mxu0
    %1119 = vmatprep.mubr.f32.mxu0 0.0
    %1120 = vmatmul.mubr.f32.gmra.mxu0 %v1004
    %v1121 = vpop.f32.mrf.mxu0
    %v1122 = vadd.f32 %v994, %v1121
    %v1123 = vpop.f32.mrf.mxu0
    %1124 = vmatprep.mubr.f32.mxu0 0.0
    %1125 = vmatmul.mubr.f32.gmra.mxu0 %v1007
    %v1126 = vpop.f32.mrf.mxu0
    %v1127 = vadd.f32 %v994, %v1126
    %v1128 = vpop.f32.mrf.mxu0
    %1129 = vmatprep.mubr.f32.mxu0 0.0
    %1130 = vmatmul.mubr.f32.gmra.mxu0 %v1010
    %v1131 = vpop.f32.mrf.mxu0
    %v1132 = vadd.f32 %v994, %v1131
    %v1133 = vpop.f32.mrf.mxu0
    %1134 = vmatprep.mubr.f32.mxu0 0.0
    %1135 = vmatmul.mubr.f32.gmra.mxu0 %v1013
    %v1136 = vpop.f32.mrf.mxu0
    %v1137 = vadd.f32 %v994, %v1136
    %v1138 = vpop.f32.mrf.mxu0
    %1139 = vmatprep.mubr.f32.mxu0 0.0
    %1140 = vmatmul.mubr.f32.gmra.mxu0 %v1016
    %v1141 = vpop.f32.mrf.mxu0
    %v1142 = vadd.f32 %v994, %v1141
    %v1143 = vpop.f32.mrf.mxu0
    %1144 = vmatprep.mubr.f32.mxu0 0.0
    %1145 = vmatmul.mubr.f32.gmra.mxu0 %v1019
    %v1146 = vpop.f32.mrf.mxu0
    %v1147 = vadd.f32 %v994, %v1146
    %v1148 = vpop.f32.mrf.mxu0
    %1149 = vmatprep.mubr.f32.mxu0 0.0
    %1150 = vmatmul.mubr.f32.gmra.mxu0 %v1022
    %v1151 = vpop.f32.mrf.mxu0
    %v1152 = vadd.f32 %v994, %v1151
    %v1153 = vpop.f32.mrf.mxu0
    %1154 = vmatprep.mubr.f32.mxu0 0.0
    %1155 = vmatmul.mubr.f32.gmra.mxu0 %v1025
    %v1156 = vpop.f32.mrf.mxu0
    %v1157 = vadd.f32 %v994, %v1156
    %v1158 = vpop.f32.mrf.mxu0
    %1159 = vmatprep.mubr.f32.mxu0 0.0
    %1160 = vmatmul.mubr.f32.gmra.mxu0 %v1028
    %v1161 = vpop.f32.mrf.mxu0
    %v1162 = vadd.f32 %v994, %v1161
    %v1163 = vpop.f32.mrf.mxu0
    %1164 = vmatprep.mubr.f32.mxu0 0.0
    %1165 = vmatmul.mubr.f32.gmra.mxu0 %v1031
    %v1166 = vpop.f32.mrf.mxu0
    %v1167 = vadd.f32 %v994, %v1166
    %v1168 = vpop.f32.mrf.mxu0
    %1169 = vmatprep.mubr.f32.mxu0 0.0
    %1170 = vmatmul.mubr.f32.gmra.mxu0 %v1034
    %v1171 = vpop.f32.mrf.mxu0
    %v1172 = vadd.f32 %v994, %v1171
    %v1173 = vpop.f32.mrf.mxu0
    %1174 = vmatprep.mubr.f32.mxu0 0.0
    %1175 = vmatmul.mubr.f32.gmra.mxu0 %v1037
    %v1176 = vpop.f32.mrf.mxu0
    %v1177 = vadd.f32 %v994, %v1176
    %v1178 = vpop.f32.mrf.mxu0
    %1179 = vmatprep.mubr.f32.mxu0 0.0
    %1180 = vmatmul.mubr.f32.gmra.mxu0 %v1040
    %v1181 = vpop.f32.mrf.mxu0
    %v1182 = vadd.f32 %v994, %v1181
    %v1183 = vpop.f32.mrf.mxu0
    %1184 = vmatprep.mubr.f32.mxu0 0.0
    %1185 = vmatmul.mubr.f32.gmra.mxu0 %v1043
    %v1186 = vpop.f32.mrf.mxu0
    %v1187 = vadd.f32 %v994, %v1186
    %v1188 = vpop.f32.mrf.mxu0
    %1189 = vdwg.mxu0
    %v1190 = vxor.u32 %v1112, 2147483648
    %v1191 = vxor.u32 %v1117, 2147483648
    %v1192 = vxor.u32 %v1122, 2147483648
    %v1193 = vxor.u32 %v1127, 2147483648
    %v1194 = vxor.u32 %v1132, 2147483648
    %v1195 = vxor.u32 %v1137, 2147483648
    %v1196 = vxor.u32 %v1142, 2147483648
    %v1197 = vxor.u32 %v1147, 2147483648
    %v1198 = vxor.u32 %v1152, 2147483648
    %v1199 = vxor.u32 %v1157, 2147483648
    %v1200 = vxor.u32 %v1162, 2147483648
    %v1201 = vxor.u32 %v1167, 2147483648
    %v1202 = vxor.u32 %v1172, 2147483648
    %v1203 = vxor.u32 %v1177, 2147483648
    %v1204 = vxor.u32 %v1182, 2147483648
    %v1205 = vxor.u32 %v1187, 2147483648
    %v1206 = vmul.f32 %v1190, 1.442695
    %v1207 = vpow.pop %v1206
    %v1208 = vmul.f32 %v1191, 1.442695
    %v1209 = vpow.pop %v1208
    %v1210 = vmul.f32 %v1192, 1.442695
    %v1211 = vpow.pop %v1210
    %v1212 = vmul.f32 %v1193, 1.442695
    %v1213 = vpow.pop %v1212
    %v1214 = vmul.f32 %v1194, 1.442695
    %v1215 = vpow.pop %v1214
    %v1216 = vmul.f32 %v1195, 1.442695
    %v1217 = vpow.pop %v1216
    %v1218 = vmul.f32 %v1196, 1.442695
    %v1219 = vpow.pop %v1218
    %v1220 = vmul.f32 %v1197, 1.442695
    %v1221 = vpow.pop %v1220
    %v1222 = vmul.f32 %v1198, 1.442695
    %v1223 = vpow.pop %v1222
    %v1224 = vmul.f32 %v1199, 1.442695
    %v1225 = vpow.pop %v1224
    %v1226 = vmul.f32 %v1200, 1.442695
    %v1227 = vpow.pop %v1226
    %v1228 = vmul.f32 %v1201, 1.442695
    %v1229 = vpow.pop %v1228
    %v1230 = vmul.f32 %v1202, 1.442695
    %v1231 = vpow.pop %v1230
    %v1232 = vmul.f32 %v1203, 1.442695
    %v1233 = vpow.pop %v1232
    %v1234 = vmul.f32 %v1204, 1.442695
    %v1235 = vpow.pop %v1234
    %v1236 = vmul.f32 %v1205, 1.442695
    %v1237 = vpow.pop %v1236
    %v1238 = vadd.f32 %v1207, 1.0
    %v1239 = vadd.f32 %v1209, 1.0
    %v1240 = vadd.f32 %v1211, 1.0
    %v1241 = vadd.f32 %v1213, 1.0
    %v1242 = vadd.f32 %v1215, 1.0
    %v1243 = vadd.f32 %v1217, 1.0
    %v1244 = vadd.f32 %v1219, 1.0
    %v1245 = vadd.f32 %v1221, 1.0
    %v1246 = vadd.f32 %v1223, 1.0
    %v1247 = vadd.f32 %v1225, 1.0
    %v1248 = vadd.f32 %v1227, 1.0
    %v1249 = vadd.f32 %v1229, 1.0
    %v1250 = vadd.f32 %v1231, 1.0
    %v1251 = vadd.f32 %v1233, 1.0
    %v1252 = vadd.f32 %v1235, 1.0
    %v1253 = vadd.f32 %v1237, 1.0
    %v1254 = vrcp.pop %v1238
    %v1255 = vmul.f32 1.0, %v1254
    %v1256 = vrcp.pop %v1239
    %v1257 = vmul.f32 1.0, %v1256
    %v1258 = vrcp.pop %v1240
    %v1259 = vmul.f32 1.0, %v1258
    %v1260 = vrcp.pop %v1241
    %v1261 = vmul.f32 1.0, %v1260
    %v1262 = vrcp.pop %v1242
    %v1263 = vmul.f32 1.0, %v1262
    %v1264 = vrcp.pop %v1243
    %v1265 = vmul.f32 1.0, %v1264
    %v1266 = vrcp.pop %v1244
    %v1267 = vmul.f32 1.0, %v1266
    %v1268 = vrcp.pop %v1245
    %v1269 = vmul.f32 1.0, %v1268
    %v1270 = vrcp.pop %v1246
    %v1271 = vmul.f32 1.0, %v1270
    %v1272 = vrcp.pop %v1247
    %v1273 = vmul.f32 1.0, %v1272
    %v1274 = vrcp.pop %v1248
    %v1275 = vmul.f32 1.0, %v1274
    %v1276 = vrcp.pop %v1249
    %v1277 = vmul.f32 1.0, %v1276
    %v1278 = vrcp.pop %v1250
    %v1279 = vmul.f32 1.0, %v1278
    %v1280 = vrcp.pop %v1251
    %v1281 = vmul.f32 1.0, %v1280
    %v1282 = vrcp.pop %v1252
    %v1283 = vmul.f32 1.0, %v1282
    %v1284 = vrcp.pop %v1253
    %v1285 = vmul.f32 1.0, %v1284
    %1286 = vst [vmem:[#allocation2] sm:$0xff] %v1255
    %1287 = vst [vmem:[#allocation2 + $0x8] sm:$0xff] %v1257
    %1288 = vst [vmem:[#allocation2 + $0x10] sm:$0xff] %v1259
    %1289 = vst [vmem:[#allocation2 + $0x18] sm:$0xff] %v1261
    %1290 = vst [vmem:[#allocation2 + $0x20] sm:$0xff] %v1263
    %1291 = vst [vmem:[#allocation2 + $0x28] sm:$0xff] %v1265
    %1292 = vst [vmem:[#allocation2 + $0x30] sm:$0xff] %v1267
    %1293 = vst [vmem:[#allocation2 + $0x38] sm:$0xff] %v1269
    %1294 = vst [vmem:[#allocation2 + $0x40] sm:$0xff] %v1271
    %1295 = vst [vmem:[#allocation2 + $0x48] sm:$0xff] %v1273
    %1296 = vst [vmem:[#allocation2 + $0x50] sm:$0xff] %v1275
    %1297 = vst [vmem:[#allocation2 + $0x58] sm:$0xff] %v1277
    %1298 = vst [vmem:[#allocation2 + $0x60] sm:$0xff] %v1279
    %1299 = vst [vmem:[#allocation2 + $0x68] sm:$0xff] %v1281
    %1300 = vst [vmem:[#allocation2 + $0x70] sm:$0xff] %v1283
    %1301 = vst [vmem:[#allocation2 + $0x78] sm:$0xff] %v1285
    // Predicated region
    $region18: #{tpu_custom_call.1} parent=1 // pred_check
      _
    $region19: #{tpu_custom_call.1} parent=1 // pred_check_branch
      %1303 = sbr.rel (0) target = $region21
    $region20: #{tpu_custom_call.1} parent=1 // pred_region
      %s1305 = ssub.s32 2048, 2048
      %1306 = vsyncadd [#allocation3], %s1305
      %s1307 = sshll.u32 [#allocation2], 4
      %s1308 = int_to_ptr.vmem [resolvable:$true] %s1307
      %1313 = dma.vmem_to_hbm [thread:$0]  %s1308, 2048, %s4, [#allocation3], 128, 128, 8
    $region21: #{tpu_custom_call.1} parent=1 // pred_fallthru
      _
    // Predicated region
    $region22: #{tpu_custom_call.1} parent=1 // pred_check
      _
    $region23: #{tpu_custom_call.1} parent=1 // pred_check_branch
      %1315 = sbr.rel (0) target = $region25
    $region24: #{tpu_custom_call.1} parent=1 // pred_region
      %1316 = dma.done [#allocation3], 2048
    $region25: #{tpu_custom_call.1} parent=1 // pred_fallthru
      _
    %1317 = vsyncpa [#allocation3], 1

</llo_original>
